<compile_context>
chip_gen: v7x
topology: tpu7x:2x2x1
jax: 0.10.0
libtpu: 0.0.40
codegen_flags: <defaults>
</compile_context>

<pallas_src>
import functools

import jax
import jax.numpy as jnp
from jax.experimental import pallas as pl
from jax.experimental.pallas import tpu as pltpu


def _round_up(x, m):
    return (x + m - 1) // m * m


def _cdiv(a, b):
    return (a + b - 1) // b


def _vmem_capacity_bytes():
    """Per-core VMEM capacity; conservative 64 MiB (v7x-sized) fallback."""
    try:
        info = pltpu.get_tpu_info()
        cap = getattr(info, "vmem_capacity_bytes", None)
        if cap:
            return max(32 * 1024 * 1024, min(int(cap), 128 * 1024 * 1024))
    except Exception:
        pass
    return 64 * 1024 * 1024


def mlm_kernel(x_ref, w_ref, b_ref, o_ref, m_ref, s_ref, *, tile_v):
    # x_ref: (TM, H)   w_ref: (H, TV)   b_ref: (1, TV)
    # o_ref: (TM, Vp)  resident across the vocab grid axis; raw logits are staged
    #                  into it per step, normalized in place at the last step.
    # m_ref / s_ref: (TM, 1) f32 running max / rescaled sum for the online LSE.
    j = pl.program_id(1)

    @pl.when(j == 0)
    def _():
        m_ref[...] = jnp.full_like(m_ref, -jnp.inf)
        s_ref[...] = jnp.zeros_like(s_ref)

    # MXU matmul for this vocab slab (f32 accumulation), bias add in f32.
    logits = jnp.dot(x_ref[...], w_ref[...], preferred_element_type=jnp.float32)
    logits = logits + b_ref[...]

    # Stage raw logits straight into the resident output block -- no separate
    # (TM, Vp) f32 scratch, and the stores are spread across vocab steps.
    col = pl.multiple_of(j * tile_v, tile_v)
    o_ref[:, pl.ds(col, tile_v)] = logits.astype(o_ref.dtype)

    # Online (running max + rescaled sum) log-sum-exp update.
    m_prev = m_ref[...]
    m_new = jnp.maximum(m_prev, jnp.max(logits, axis=-1, keepdims=True))
    s_ref[...] = (s_ref[...] * jnp.exp(m_prev - m_new)
                  + jnp.sum(jnp.exp(logits - m_new), axis=-1, keepdims=True))
    m_ref[...] = m_new

    # Finalize: subtract the log-sum-exp in place at the last vocab step.
    @pl.when(j == pl.num_programs(1) - 1)
    def _():
        lse = m_ref[...] + jnp.log(s_ref[...])
        o_ref[...] = (o_ref[...].astype(jnp.float32) - lse).astype(o_ref.dtype)


def _choose_tiles(M, H, V, c_size, o_size, vmem_cap, tile_m, tile_v):
    budget = max(8 << 20, vmem_cap - (16 << 20))   # headroom for Mosaic scratch
    v128 = _round_up(V, 128)

    # ---- vocab tile --------------------------------------------------------
    if tile_v is None:
        tv_target = 1024 if vmem_cap > (96 << 20) else 512   # v5e/v6e : v7x
        tv_target = min(tv_target, v128)
        # Prefer a tile that divides the 128-aligned vocab so the (H, V) weight
        # does not need a wrapper-side pad/copy.
        tv = next((c for c in range(tv_target, 127, -128) if v128 % c == 0),
                  tv_target)
    else:
        tv = min(_round_up(max(tile_v, 128), 128), v128)
    Vp = _round_up(V, tv)

    # ---- row tile ----------------------------------------------------------
    # Per-row-tile VMEM: double-buffered x tile + resident (double-buffered)
    # output block + stats.  Fixed: double-buffered weight/bias slabs + slack.
    fixed = 2 * H * tv * c_size + 2 * tv * 4 + (1 << 20)
    per_tm = 2 * H * c_size + 2 * Vp * o_size + 16
    while tv > 128 and (budget - fixed) < 8 * per_tm:
        tv = max(128, (tv // 2) // 128 * 128)
        Vp = _round_up(V, tv)
        fixed = 2 * H * tv * c_size + 2 * tv * 4 + (1 << 20)
        per_tm = 2 * H * c_size + 2 * Vp * o_size + 16
    tm_cap = max(8, (budget - fixed) // per_tm)

    tm_target = 768 if tile_m is None else tile_m   # >= HBM/MXU balance (v6e)
    tm = max(8, min(tm_target, tm_cap, _round_up(M, 8)))
    tm = (tm // 8) * 8

    # Balance row tiles (avoid ~50% padded-row waste) and keep >= 2 tiles when
    # possible so the "parallel" row axis shards across both v7x TensorCores.
    nmt = _cdiv(M, tm)
    if M >= 16:
        nmt = max(nmt, 2)
    tm = _round_up(_cdiv(M, nmt), 8)
    Mp = nmt * tm
    return tm, tv, Mp, Vp


@functools.partial(
    jax.jit, static_argnames=("tile_m", "tile_v", "compute_dtype", "out_dtype"))
def mask_language_model(x, w, b, *, tile_m=None, tile_v=None,
                        compute_dtype="bfloat16", out_dtype=None):
    """Fused Linear(hidden -> vocab) + LogSoftmax(dim=-1).

    x: (B, S, H); w: (H, V); b: (V,).  Returns (B, S, V) log-probs.

    compute_dtype: dtype of the MXU matmul inputs (default bfloat16; halves the
      weight HBM traffic and doubles MXU rate; accumulation and softmax math
      stay float32).  Pass "float32" for bit-accurate logits.
    out_dtype: output dtype (default x.dtype).  bfloat16 halves output HBM
      traffic and the resident VMEM block (allows larger row tiles on v7x).
    For best performance pass w already in `compute_dtype` and V a multiple of
    128 so no wrapper-side copy of the (H, V) weight is ever made.
    """
    B, S, H = x.shape
    V = w.shape[1]
    M = B * S

    cdt = jnp.dtype(compute_dtype)
    odt = jnp.dtype(out_dtype) if out_dtype is not None else x.dtype
    c_size = cdt.itemsize
    o_size = odt.itemsize

    vmem_cap = _vmem_capacity_bytes()
    tm, tv, Mp, Vp = _choose_tiles(M, H, V, c_size, o_size, vmem_cap,
                                   tile_m, tile_v)

    x2d = x.reshape(M, H)
    if x2d.dtype != cdt:
        x2d = x2d.astype(cdt)
    if Mp != M:
        x2d = jnp.pad(x2d, ((0, Mp - M), (0, 0)))        # zero rows, sliced away

    w_c = w if w.dtype == cdt else w.astype(cdt)
    b_f = b.astype(jnp.float32)
    if Vp != V:
        # Only hit when V is not a multiple of the vocab tile; padded columns
        # get zero weights and a -1e30 bias so exp() contributes 0 to the LSE.
        w_c = jnp.pad(w_c, ((0, 0), (0, Vp - V)))
        b_f = jnp.pad(b_f, (0, Vp - V), constant_values=-1e30)
    b2d = b_f.reshape(1, Vp)

    grid = (Mp // tm, Vp // tv)

    cost = pl.CostEstimate(
        flops=2 * M * H * V,
        transcendentals=M * V,
        bytes_accessed=int(Mp * H * c_size                 # activations (once)
                           + (Mp // tm) * H * Vp * c_size  # weight re-streaming
                           + (Mp // tm) * Vp * 4           # bias re-streaming
                           + Mp * Vp * o_size),            # output write
    )

    vmem_est = (2 * tm * H * c_size       # x tile (double-buffered)
                + 2 * H * tv * c_size     # weight slab (double-buffered)
                + 2 * tv * 4              # bias slab
                + 2 * tm * Vp * o_size    # resident output block (double-buffered)
                + 4 * tm * 4)             # running max / sum scratch
    vmem_limit = int(min(max(int(1.25 * vmem_est), 8 << 20),
                         vmem_cap - (8 << 20)))

    out = pl.pallas_call(
        functools.partial(mlm_kernel, tile_v=tv),
        out_shape=jax.ShapeDtypeStruct((Mp, Vp), odt),
        grid_spec=pltpu.PrefetchScalarGridSpec(
            num_scalar_prefetch=0,
            grid=grid,
            in_specs=[
                pl.BlockSpec((tm, H), lambda i, j: (i, 0)),  # row tile (resident over j)
                pl.BlockSpec((H, tv), lambda i, j: (0, j)),  # streamed weight slab
                pl.BlockSpec((1, tv), lambda i, j: (0, j)),  # bias slab
            ],
            out_specs=pl.BlockSpec((tm, Vp), lambda i, j: (i, 0)),  # resident over j
            scratch_shapes=[
                pltpu.VMEM((tm, 1), jnp.float32),   # running max
                pltpu.VMEM((tm, 1), jnp.float32),   # running (rescaled) sum
            ],
        ),
        compiler_params=pltpu.CompilerParams(
            dimension_semantics=("parallel", "arbitrary"),
            vmem_limit_bytes=vmem_limit,
        ),
        cost_estimate=cost,
    )(x2d, w_c, b2d)

    return out[:M, :V].reshape(B, S, V)


def _reference(x, w, b):
    return jax.nn.log_softmax(jnp.einsum("bsh,hv->bsv", x, w) + b, axis=-1)


if __name__ == "__main__":
    def make_inputs(key, B, S, H, V):
        kx, kw, kb = jax.random.split(key, 3)
        bound = 1.0 / jnp.sqrt(jnp.float32(H))
        x = jax.random.normal(kx, (B, S, H), dtype=jnp.float32)
        w = jax.random.uniform(kw, (H, V), dtype=jnp.float32,
                               minval=-bound, maxval=bound)
        b = jax.random.uniform(kb, (V,), dtype=jnp.float32,
                               minval=-bound, maxval=bound)
        return x, w, b

    # --- Test 1: module-spec shapes, f32 compute, auto tiling ----------------
    x, w, b = make_inputs(jax.random.PRNGKey(0), 2, 8, 32, 128)
    out = jax.block_until_ready(mask_language_model(x, w, b, compute_dtype="float32"))
    ref = _reference(x, w, b)
    assert out.shape == (2, 8, 128) and out.dtype == x.dtype
    assert jnp.allclose(out, ref, atol=1e-5, rtol=1e-5)

    # --- Test 2: ragged M (26 rows) + multi-step vocab streaming, f32 --------
    x2, w2, b2 = make_inputs(jax.random.PRNGKey(1), 2, 13, 32, 384)
    out2 = jax.block_until_ready(
        mask_language_model(x2, w2, b2, tile_m=8, tile_v=128,
                            compute_dtype="float32"))
    ref2 = _reference(x2, w2, b2)
    assert out2.shape == (2, 13, 384)
    assert jnp.allclose(out2, ref2, atol=1e-5, rtol=1e-5)

    # --- Test 3: default bf16 matmul path (f32 accumulation / softmax) -------
    out3 = jax.block_until_ready(mask_language_model(x2, w2, b2))
    assert jnp.allclose(out3, ref2, atol=5e-2, rtol=5e-2)

    # --- Test 4: auto-tiled streaming path, then bf16 output -----------------
    x4, w4, b4 = make_inputs(jax.random.PRNGKey(2), 4, 64, 128, 2048)
    ref4 = _reference(x4, w4, b4)
    out4 = jax.block_until_ready(mask_language_model(x4, w4, b4))
    assert out4.shape == (4, 64, 2048)
    assert jnp.allclose(out4, ref4, atol=5e-2, rtol=5e-2)

    out5 = jax.block_until_ready(
        mask_language_model(x4, w4, b4, out_dtype="bfloat16"))
    assert out5.dtype == jnp.bfloat16
    assert jnp.allclose(out5.astype(jnp.float32), ref4, atol=2e-1, rtol=2e-2)

    print("KERNEL_OK")
</pallas_src>

<mosaic_0001>
module attributes {stable_mosaic.version = 11 : i64} {
  func.func @mlm_kernel(%arg0: i32, %arg1: i32, %arg2: memref<8x32xf32, #tpu.memory_space<vmem>>, %arg3: memref<32x128xf32, #tpu.memory_space<vmem>>, %arg4: memref<1x128xf32, #tpu.memory_space<vmem>>, %arg5: memref<8x128xf32, #tpu.memory_space<vmem>>, %arg6: memref<8x1xf32, #tpu.memory_space<vmem>>, %arg7: memref<8x1xf32, #tpu.memory_space<vmem>>) attributes {dimension_semantics = [#tpu.dimension_semantics<parallel>, #tpu.dimension_semantics<arbitrary>], iteration_bounds = array<i64: 2, 1>, scalar_prefetch = 0 : i64, scratch_operands = 2 : i64, tpu.core_type = #tpu.core_type<tc>, window_params = [{transform_indices = @transform_0, window_bounds = array<i64: 8, 32>}, {transform_indices = @transform_1, window_bounds = array<i64: 32, 128>}, {transform_indices = @transform_2, window_bounds = array<i64: 1, 128>}, {transform_indices = @transform_3, window_bounds = array<i64: 8, 128>}]} {
    %c0_i32 = arith.constant 0 : i32
    %0 = arith.cmpi eq, %arg1, %c0_i32 : i32
    %1 = arith.extui %0 : i1 to i32
    %c0_i32_0 = arith.constant 0 : i32
    %2 = arith.cmpi ne, %1, %c0_i32_0 : i32
    scf.if %2 {
      %cst_19 = arith.constant 0xFF800000 : f32
      %32 = vector.broadcast %cst_19 : f32 to vector<8x1xf32>
      %c0_20 = arith.constant 0 : index
      %c0_21 = arith.constant 0 : index
      %33 = vector.load %arg6[%c0_20, %c0_21] : memref<8x1xf32, #tpu.memory_space<vmem>>, vector<8x1xf32>
      tpu.vector_store %arg6[%c0_20, %c0_21], %32 {strides = array<i32>} : memref<8x1xf32, #tpu.memory_space<vmem>>, vector<8x1xf32>,
      %cst_22 = arith.constant 0.000000e+00 : f32
      %34 = vector.broadcast %cst_22 : f32 to vector<8x1xf32>
      %c0_23 = arith.constant 0 : index
      %c0_24 = arith.constant 0 : index
      %35 = vector.load %arg7[%c0_23, %c0_24] : memref<8x1xf32, #tpu.memory_space<vmem>>, vector<8x1xf32>
      tpu.vector_store %arg7[%c0_23, %c0_24], %34 {strides = array<i32>} : memref<8x1xf32, #tpu.memory_space<vmem>>, vector<8x1xf32>,
    } else {
    }
    %c0 = arith.constant 0 : index
    %c0_1 = arith.constant 0 : index
    %3 = vector.load %arg2[%c0, %c0_1] : memref<8x32xf32, #tpu.memory_space<vmem>>, vector<8x32xf32>
    %c0_2 = arith.constant 0 : index
    %c0_3 = arith.constant 0 : index
    %4 = vector.load %arg3[%c0_2, %c0_3] : memref<32x128xf32, #tpu.memory_space<vmem>>, vector<32x128xf32>
    %cst = arith.constant dense<0.000000e+00> : vector<8x128xf32>
    %5 = tpu.matmul %3, %4, %cst {dimension_numbers = #tpu.dot_dimension_numbers<[1], [0], [0], [1], [0, 0, 1, 1], [], []>} : vector<8x32xf32>, vector<32x128xf32>, vector<8x128xf32> -> vector<8x128xf32>
    %c0_4 = arith.constant 0 : index
    %c0_5 = arith.constant 0 : index
    %6 = vector.load %arg4[%c0_4, %c0_5] : memref<1x128xf32, #tpu.memory_space<vmem>>, vector<1x128xf32>
    %7 = vector.broadcast %6 : vector<1x128xf32> to vector<8x128xf32>
    %8 = arith.addf %5, %7 : vector<8x128xf32>
    %c128_i32 = arith.constant 128 : i32
    %9 = arith.muli %arg1, %c128_i32 : i32
    %10 = tpu.assume_multiple %9, 128 : i32
    %c0_6 = arith.constant 0 : index
    %11 = arith.index_cast %10 : i32 to index
    %12 = vector.load %arg5[%c0_6, %11] : memref<8x128xf32, #tpu.memory_space<vmem>>, vector<8x128xf32>
    tpu.vector_store %arg5[%c0_6, %11], %8 {strides = array<i32>} : memref<8x128xf32, #tpu.memory_space<vmem>>, vector<8x128xf32>,
    %c0_7 = arith.constant 0 : index
    %c0_8 = arith.constant 0 : index
    %13 = vector.load %arg6[%c0_7, %c0_8] : memref<8x1xf32, #tpu.memory_space<vmem>>, vector<8x1xf32>
    %cst_9 = arith.constant dense<0xFF800000> : vector<8xf32>
    %14 = vector.multi_reduction <maximumf>, %8, %cst_9 [1] : vector<8x128xf32> to vector<8xf32>
    %15 = vector.shape_cast %14 : vector<8xf32> to vector<8x1xf32>
    %16 = arith.maximumf %13, %15 : vector<8x1xf32>
    %c0_10 = arith.constant 0 : index
    %c0_11 = arith.constant 0 : index
    %17 = vector.load %arg7[%c0_10, %c0_11] : memref<8x1xf32, #tpu.memory_space<vmem>>, vector<8x1xf32>
    %18 = arith.subf %13, %16 : vector<8x1xf32>
    %19 = math.exp %18 : vector<8x1xf32>
    %20 = arith.mulf %17, %19 : vector<8x1xf32>
    %21 = vector.broadcast %16 : vector<8x1xf32> to vector<8x128xf32>
    %22 = arith.subf %8, %21 : vector<8x128xf32>
    %23 = math.exp %22 : vector<8x128xf32>
    %cst_12 = arith.constant dense<0.000000e+00> : vector<8xf32>
    %24 = vector.multi_reduction <add>, %23, %cst_12 [1] : vector<8x128xf32> to vector<8xf32>
    %25 = vector.shape_cast %24 : vector<8xf32> to vector<8x1xf32>
    %26 = arith.addf %20, %25 : vector<8x1xf32>
    %c0_13 = arith.constant 0 : index
    %c0_14 = arith.constant 0 : index
    %27 = vector.load %arg7[%c0_13, %c0_14] : memref<8x1xf32, #tpu.memory_space<vmem>>, vector<8x1xf32>
    tpu.vector_store %arg7[%c0_13, %c0_14], %26 {strides = array<i32>} : memref<8x1xf32, #tpu.memory_space<vmem>>, vector<8x1xf32>,
    %c0_15 = arith.constant 0 : index
    %c0_16 = arith.constant 0 : index
    %28 = vector.load %arg6[%c0_15, %c0_16] : memref<8x1xf32, #tpu.memory_space<vmem>>, vector<8x1xf32>
    tpu.vector_store %arg6[%c0_15, %c0_16], %16 {strides = array<i32>} : memref<8x1xf32, #tpu.memory_space<vmem>>, vector<8x1xf32>,
    %c0_i32_17 = arith.constant 0 : i32
    %29 = arith.cmpi eq, %arg1, %c0_i32_17 : i32
    %30 = arith.extui %29 : i1 to i32
    %c0_i32_18 = arith.constant 0 : i32
    %31 = arith.cmpi ne, %30, %c0_i32_18 : i32
    scf.if %31 {
      %c0_19 = arith.constant 0 : index
      %c0_20 = arith.constant 0 : index
      %32 = vector.load %arg6[%c0_19, %c0_20] : memref<8x1xf32, #tpu.memory_space<vmem>>, vector<8x1xf32>
      %c0_21 = arith.constant 0 : index
      %c0_22 = arith.constant 0 : index
      %33 = vector.load %arg7[%c0_21, %c0_22] : memref<8x1xf32, #tpu.memory_space<vmem>>, vector<8x1xf32>
      %34 = math.log %33 : vector<8x1xf32>
      %35 = arith.addf %32, %34 : vector<8x1xf32>
      %c0_23 = arith.constant 0 : index
      %c0_24 = arith.constant 0 : index
      %36 = vector.load %arg5[%c0_23, %c0_24] : memref<8x128xf32, #tpu.memory_space<vmem>>, vector<8x128xf32>
      %37 = vector.broadcast %35 : vector<8x1xf32> to vector<8x128xf32>
      %38 = arith.subf %36, %37 : vector<8x128xf32>
      %c0_25 = arith.constant 0 : index
      %c0_26 = arith.constant 0 : index
      %39 = vector.load %arg5[%c0_25, %c0_26] : memref<8x128xf32, #tpu.memory_space<vmem>>, vector<8x128xf32>
      tpu.vector_store %arg5[%c0_25, %c0_26], %38 {strides = array<i32>} : memref<8x128xf32, #tpu.memory_space<vmem>>, vector<8x128xf32>,
    } else {
    }
    return
  }
  func.func @transform_0(%arg0: i32, %arg1: i32) -> (i32, i32) {
    %c0_i32 = arith.constant 0 : i32
    %c0_i32_0 = arith.constant 0 : i32
    return %arg0, %c0_i32 : i32, i32
  }
  func.func @transform_1(%arg0: i32, %arg1: i32) -> (i32, i32) {
    %c0_i32 = arith.constant 0 : i32
    %c0_i32_0 = arith.constant 0 : i32
    return %c0_i32, %arg1 : i32, i32
  }
  func.func @transform_2(%arg0: i32, %arg1: i32) -> (i32, i32) {
    %c0_i32 = arith.constant 0 : i32
    %c0_i32_0 = arith.constant 0 : i32
    return %c0_i32, %arg1 : i32, i32
  }
  func.func @transform_3(%arg0: i32, %arg1: i32) -> (i32, i32) {
    %c0_i32 = arith.constant 0 : i32
    %c0_i32_0 = arith.constant 0 : i32
    return %arg0, %c0_i32 : i32, i32
  }
}

</mosaic_0001>

<llo_original>
// kernel: mask_language_model.1
$region0: #{mask_language_model.1}
  #allocation0 [shape = 'u32[]', space=smem, size = 0x4, offset = 0x4, fixed_abs, tag = 'smem constant byte address 0x4 - core index']
  #allocation1 [shape = 'u32[144,128]{1,0:T(1,128)}', space=vmem, size = 0x12000, scoped, tag = 'internal scratch']
  #allocation2 [shape = 'f32[8,1]{1,0:T(8,128)}', space=vmem, size = 0x1000, scoped, tag = 'scratch operand']
  #allocation3 [shape = 'f32[8,1]{1,0:T(8,128)}', space=vmem, size = 0x1000, scoped, tag = 'scratch operand']
  %s0 = inlined_call_operand.hbm [shape: f32[16,32], index: 0, kind: input, shape index: {}]
  %s1 = inlined_call_operand.hbm [shape: f32[32,128], index: 1, kind: input, shape index: {}]
  %s2 = inlined_call_operand.vmem [shape: f32[1,128], index: 2, kind: input, shape index: {}]
  %s3 = inlined_call_operand.hbm [shape: f32[16,128], index: 3, kind: output, shape index: {}]
  %s4 = sld [smem:[#allocation0]]
  $region61: #{mask_language_model.1} parent=0
    _
  %s6 = ssub.s32 1, %s4
  %s7 = scalar_select 0, %s6, %s4
  $region1: #{mask_language_model.1} parent=0
    #allocation4 [shape = 'u8[8192]{0}', space=vmem, size = 0x2000, scoped, tag = 'input window, operand 0']
    #allocation5 [shape = 's32[2]{0}', space=sflag, size = 0x8, scoped, tag = 'scoped memory for mask_language_model.1']
    #allocation6 [shape = 's32[2]{0}', space=sflag, size = 0x8, scoped, tag = 'scoped memory for mask_language_model.1']
    #allocation7 [shape = 'u8[16384]{0}', space=vmem, size = 0x4000, scoped, tag = 'input window, operand 1, single buffered']
    #allocation8 [shape = 's32[1]{0}', space=sflag, size = 0x4, scoped, tag = 'scoped memory for mask_language_model.1']
    #allocation9 [shape = 'u8[8192]{0}', space=vmem, size = 0x2000, scoped, tag = 'output window, operand 0']
    %8 = vsyncpa [#allocation5], 0
    %s9 = scalar_lea.sflag [#allocation5], 1
    %10 = vsyncpa %s9, 0
    %11 = vsyncpa [#allocation8], 0
    %12 = vsyncpa [#allocation6], 0
    %s13 = scalar_lea.sflag [#allocation6], 1
    %14 = vsyncpa %s13, 0
    loop: start=0, step=1, limit=4
    $region2: #{mask_language_model.1} parent=1 // loop_pre_header
      _
    $region3: #{mask_language_model.1} parent=1 // loop_header
      %s16 = sphi 0, %s20
      %p17 = scmp.ge.s32.totalorder %s16, 4
      %s23 = sphi 0, %s35
      %s24 = sphi 0, %s31
      %s25 = sphi 0, %s23
      %s26 = sphi 0, %s24
      %s27 = sphi 0, %s25
      %s28 = sphi 0, %s26
      %s38 = sphi 0, %s40
      %s41 = sphi 0, %s38
      %s42 = sphi 0, %s41
      %s58 = sphi 0, %s42
      %s64 = sphi 0, %s66
      %s67 = sphi 0, %s64
      %s68 = sphi 0, %s67
      %s84 = sphi 0, %s68
      %s90 = sphi 0, %s92
      %s93 = sphi 0, %s90
      %s94 = sphi 0, %s93
      %s110 = sphi 0, %s94
      %s116 = sphi 0, %s118
      %s119 = sphi 0, %s116
      %s120 = sphi 0, %s119
      %s136 = sphi 0, %s120
    $region4: #{mask_language_model.1} parent=1 // loop_header_branch
      %19 = sbr.rel (%p17) target = $region8
    $region5: #{mask_language_model.1} parent=1 // loop_body
      %s21 = ssub.s32 %s16, 1
      %s22 = ssub.s32 %s16, 2
      %s29 = sadd.s32 1, %s24
      %p30 = scmp.ge.s32.totalorder %s29, 1
      %s31 = scalar_select %p30, 0, %s29
      %s32 = sadd.s32 1, %s23
      %s33 = scalar_select %p30, %s32, %s23
      %p34 = scmp.ge.s32.totalorder %s33, 2
      %s35 = scalar_select %p34, 0, %s33
      %s36 = ssub.s32 %s23, %s35
      %p37 = scmp.eq.s32.totalorder %s36, 0
      %s39 = sadd.s32 %s38, 1
      %s40 = scalar_select %p37, %s38, %s39
      %p43 = pneg %p37
      %p44 = scmp.eq.s32.totalorder %s16, 1
      %p45 = por %p43, %p44
      %p46 = scmp.ne.s32.totalorder %s38, %s41
      %p47 = scmp.eq.s32.totalorder %s16, 0
      %p48 = por %p46, %p47
      %p49 = scmp.ne.s32.totalorder %s38, %s41
      %p50 = scmp.eq.s32.totalorder %s21, 1
      %p51 = por %p49, %p50
      %p52 = scmp.ne.s32.totalorder %s41, %s42
      %p53 = scmp.eq.s32.totalorder %s21, 0
      %p54 = por %p52, %p53
      %p55 = scmp.ne.s32.totalorder %s41, %s42
      %p56 = scmp.eq.s32.totalorder %s22, 1
      %p57 = por %p55, %p56
      %p59 = scmp.ne.s32.totalorder %s42, %s58
      %p60 = scmp.eq.s32.totalorder %s22, 0
      %p61 = por %p59, %p60
      %s62 = ssub.s32 %s24, %s31
      %p63 = scmp.eq.s32.totalorder %s62, 0
      %s65 = sadd.s32 %s64, 1
      %s66 = scalar_select %p63, %s64, %s65
      %p69 = pneg %p63
      %p70 = scmp.eq.s32.totalorder %s16, 1
      %p71 = por %p69, %p70
      %p72 = scmp.ne.s32.totalorder %s64, %s67
      %p73 = scmp.eq.s32.totalorder %s16, 0
      %p74 = por %p72, %p73
      %p75 = scmp.ne.s32.totalorder %s64, %s67
      %p76 = scmp.eq.s32.totalorder %s21, 1
      %p77 = por %p75, %p76
      %p78 = scmp.ne.s32.totalorder %s67, %s68
      %p79 = scmp.eq.s32.totalorder %s21, 0
      %p80 = por %p78, %p79
      %p81 = scmp.ne.s32.totalorder %s67, %s68
      %p82 = scmp.eq.s32.totalorder %s22, 1
      %p83 = por %p81, %p82
      %p85 = scmp.ne.s32.totalorder %s68, %s84
      %p86 = scmp.eq.s32.totalorder %s22, 0
      %p87 = por %p85, %p86
      %s88 = ssub.s32 %s24, %s31
      %p89 = scmp.eq.s32.totalorder %s88, 0
      %s91 = sadd.s32 %s90, 1
      %s92 = scalar_select %p89, %s90, %s91
      %p95 = pneg %p89
      %p96 = scmp.eq.s32.totalorder %s16, 1
      %p97 = por %p95, %p96
      %p98 = scmp.ne.s32.totalorder %s90, %s93
      %p99 = scmp.eq.s32.totalorder %s16, 0
      %p100 = por %p98, %p99
      %p101 = scmp.ne.s32.totalorder %s90, %s93
      %p102 = scmp.eq.s32.totalorder %s21, 1
      %p103 = por %p101, %p102
      %p104 = scmp.ne.s32.totalorder %s93, %s94
      %p105 = scmp.eq.s32.totalorder %s21, 0
      %p106 = por %p104, %p105
      %p107 = scmp.ne.s32.totalorder %s93, %s94
      %p108 = scmp.eq.s32.totalorder %s22, 1
      %p109 = por %p107, %p108
      %p111 = scmp.ne.s32.totalorder %s94, %s110
      %p112 = scmp.eq.s32.totalorder %s22, 0
      %p113 = por %p111, %p112
      %s114 = ssub.s32 %s23, %s35
      %p115 = scmp.eq.s32.totalorder %s114, 0
      %s117 = sadd.s32 %s116, 1
      %s118 = scalar_select %p115, %s116, %s117
      %p121 = pneg %p115
      %p122 = scmp.eq.s32.totalorder %s16, 1
      %p123 = por %p121, %p122
      %p124 = scmp.ne.s32.totalorder %s116, %s119
      %p125 = scmp.eq.s32.totalorder %s16, 0
      %p126 = por %p124, %p125
      %p127 = scmp.ne.s32.totalorder %s116, %s119
      %p128 = scmp.eq.s32.totalorder %s21, 1
      %p129 = por %p127, %p128
      %p130 = scmp.ne.s32.totalorder %s119, %s120
      %p131 = scmp.eq.s32.totalorder %s21, 0
      %p132 = por %p130, %p131
      %p133 = scmp.ne.s32.totalorder %s119, %s120
      %p134 = scmp.eq.s32.totalorder %s22, 1
      %p135 = por %p133, %p134
      %p137 = scmp.ne.s32.totalorder %s120, %s136
      %p138 = scmp.eq.s32.totalorder %s22, 0
      %p139 = por %p137, %p138
      %p140 = scmp.le.s32.totalorder 1, %s16
      %p141 = scmp.lt.s32.totalorder %s16, 3
      %p142 = pnand %p140, %p141
      %p143 = pneg %p142
      // Predicated region
      $region9: #{mask_language_model.1} parent=5 // pred_check
        _
      $region10: #{mask_language_model.1} parent=5 // pred_check_branch
        %145 = sbr.rel (%p142) target = $region12
      $region11: #{mask_language_model.1} parent=5 // pred_region
        %s146 = ssub.s32 %s16, 1
        // Predicated region
        $region13: #{mask_language_model.1} parent=11 // pred_check
          %p147 = pneg %p80
        $region14: #{mask_language_model.1} parent=11 // pred_check_branch
          %149 = sbr.rel (%p147) target = $region16
        $region15: #{mask_language_model.1} parent=11 // pred_region
          %s151 = ssub.s32 512, 512
          %152 = vsyncadd [#allocation8], %s151
          %s153 = smul.addr %s26, 128
          %s154 = scalar_lea.hbm %s1, %s153
          %s155 = sshll.u32 [#allocation7], 4
          %s156 = int_to_ptr.vmem [resolvable:$true] %s155
          %161 = dma.hbm_to_vmem [thread:$0]  %s154, 512, %s156, [#allocation8], 128, 128, 8
        $region16: #{mask_language_model.1} parent=11 // pred_fallthru
          _
        // Predicated region
        $region17: #{mask_language_model.1} parent=11 // pred_check
          %p162 = pneg %p106
        $region18: #{mask_language_model.1} parent=11 // pred_check_branch
          %164 = sbr.rel (%p162) target = $region20
        $region19: #{mask_language_model.1} parent=11 // pred_region
          %p165 = scmp.lt.s32.totalorder %s26, 0
          %s166 = scalar_select %p165, %s26, 0
          %s167 = scalar_lea.vmem %s2, %s166
        $region20: #{mask_language_model.1} parent=11 // pred_fallthru
          _
      $region12: #{mask_language_model.1} parent=5 // pred_fallthru
        _
      %p168 = scmp.lt.s32.totalorder %s16, 2
      // Predicated region
      $region21: #{mask_language_model.1} parent=5 // pred_check
        %p169 = pneg %p168
      $region22: #{mask_language_model.1} parent=5 // pred_check_branch
        %171 = sbr.rel (%p169) target = $region24
      $region23: #{mask_language_model.1} parent=5 // pred_region
        // Predicated region
        $region25: #{mask_language_model.1} parent=23 // pred_check
          %p172 = pneg %p48
        $region26: #{mask_language_model.1} parent=23 // pred_check_branch
          %174 = sbr.rel (%p172) target = $region28
        $region27: #{mask_language_model.1} parent=23 // pred_region
          %s175 = sand.u32 %s38, 1
          %s176 = scalar_lea.sflag [#allocation5], %s175
          %s177 = sand.u32 %s38, 1
          %s178 = smul.addr %s177, 8
          %s179 = scalar_lea.vmem [#allocation4], %s178
          %s181 = ssub.s32 128, 128
          %182 = vsyncadd %s176, %s181
          %s183 = smul.addr %s23, 128
          %s184 = scalar_lea.hbm %s0, %s183
          %s186 = sshll.u32 %s179, 4
          %s187 = int_to_ptr.vmem [resolvable:$true] %s186
          %189 = dma.hbm_to_vmem [thread:$0]  %s184, 128, %s187, %s176
        $region28: #{mask_language_model.1} parent=23 // pred_fallthru
          _
      $region24: #{mask_language_model.1} parent=5 // pred_fallthru
        _
      %p190 = scmp.le.s32.totalorder 1, %s16
      %p191 = scmp.lt.s32.totalorder %s16, 3
      %p192 = pnand %p190, %p191
      %p193 = pneg %p192
      // Predicated region
      $region29: #{mask_language_model.1} parent=5 // pred_check
        _
      $region30: #{mask_language_model.1} parent=5 // pred_check_branch
        %195 = sbr.rel (%p192) target = $region32
      $region31: #{mask_language_model.1} parent=5 // pred_region
        %s196 = ssub.s32 %s16, 1
        %s197 = sand.u32 %s41, 1
        %s198 = scalar_lea.sflag [#allocation5], %s197
        %s199 = sand.u32 %s41, 1
        %s200 = smul.addr %s199, 8
        %s201 = scalar_lea.vmem [#allocation4], %s200
        // Predicated region
        $region33: #{mask_language_model.1} parent=31 // pred_check
          %p202 = pneg %p54
        $region34: #{mask_language_model.1} parent=31 // pred_check_branch
          %204 = sbr.rel (%p202) target = $region36
        $region35: #{mask_language_model.1} parent=31 // pred_region
          %205 = dma.done %s198, 128
        $region36: #{mask_language_model.1} parent=31 // pred_fallthru
          _
        // Predicated region
        $region37: #{mask_language_model.1} parent=31 // pred_check
          %p206 = pneg %p80
        $region38: #{mask_language_model.1} parent=31 // pred_check_branch
          %208 = sbr.rel (%p206) target = $region40
        $region39: #{mask_language_model.1} parent=31 // pred_region
          %209 = dma.done [#allocation8], 512
        $region40: #{mask_language_model.1} parent=31 // pred_fallthru
          _
        %s210 = sand.u32 %s41, 1
        %s211 = scalar_lea.sflag [#allocation5], %s210
        %s212 = sand.u32 %s41, 1
        %s213 = smul.addr %s212, 8
        %s214 = scalar_lea.vmem [#allocation4], %s213
        %p215 = pneg %p54
        %p216 = pneg %p51
        %p217 = pneg %p80
        %p218 = pneg %p77
        %p219 = scmp.lt.s32.totalorder %s26, 0
        %s220 = scalar_select %p219, %s26, 0
        %s221 = scalar_lea.vmem %s2, %s220
        %p222 = pneg %p106
        %p223 = pneg %p103
        %p224 = pneg %p132
        %p225 = pneg %p129
        %s226 = sand.u32 %s119, 1
        %s227 = scalar_lea.sflag [#allocation6], %s226
        %s228 = sand.u32 %s119, 1
        %s229 = smul.addr %s228, 8
        %s230 = scalar_lea.vmem [#allocation9], %s229
        %p231 = scmp.lt.s32.totalorder %s26, 0
        %s232 = scalar_select %p231, %s26, 0
        %s233 = scalar_lea.vmem %s2, %s232
        %p234 = scmp.eq.s32.totalorder %s26, 0
        // Predicated region
        $region41: #{mask_language_model.1} parent=31 // pred_check
          %p235 = pneg %p234
        $region42: #{mask_language_model.1} parent=31 // pred_check_branch
          %237 = sbr.rel (%p235) target = $region44
        $region43: #{mask_language_model.1} parent=31 // pred_region
          %vm238 = vcmask 7168
          %239 = vst.msk [vmem:[#allocation2] sm:$0xff] %vm238, -inf
          %240 = vst.msk [vmem:[#allocation3] sm:$0xff] %vm238, 0.0
        $region44: #{mask_language_model.1} parent=31 // pred_fallthru
          _
        %v241 = vld [vmem:[%s201] sm:$0xff]
        %v242 = vld [vmem:[#allocation7] sm:$0xff]
        %v243 = vld [vmem:[#allocation7 + $0x8] sm:$0xff]
        %v244 = vld [vmem:[#allocation7 + $0x10] sm:$0xff]
        %v245 = vld [vmem:[#allocation7 + $0x18] sm:$0xff]
        %v246 = vld [vmem:[%s233] sm:$0x1]
        %v248 = vlaneseq
        %v249 = vshrl.u32 %v248, 7
        %v250 = vsub.s32 0, %v249
        %v251 = vrot.slane %v246, %v250
        %vm253 = vcmask 261120
        %v255 = vsel %vm253, %v241, 0
        %257 = vmatprep.subr.mxu0 0.0
        %258 = vmatpush1.msra.mxu0 %v242
        %259 = vmatprep.subr.mxu0 0.0
        %260 = vmatpush1.msra.mxu0 %v243
        %261 = vmatprep.subr.mxu0 0.0
        %262 = vmatpush1.msra.mxu0 %v244
        %263 = vmatprep.subr.mxu0 0.0
        %264 = vmatpush1.msra.mxu0 %v245
        %265 = vmatprep.subr.mxu0 0.0
        %266 = vmatpush1.msra.mxu0 0.0
        %267 = vmatprep.subr.mxu0 0.0
        %268 = vmatpush1.msra.mxu0 0.0
        %269 = vmatprep.subr.mxu0 0.0
        %270 = vmatpush1.msra.mxu0 0.0
        %271 = vmatprep.subr.mxu0 0.0
        %272 = vmatpush1.msra.mxu0 0.0
        %273 = vmatprep.subr.mxu0 0.0
        %274 = vmatpush1.msra.mxu0 0.0
        %275 = vmatprep.subr.mxu0 0.0
        %276 = vmatpush1.msra.mxu0 0.0
        %277 = vmatprep.subr.mxu0 0.0
        %278 = vmatpush1.msra.mxu0 0.0
        %279 = vmatprep.subr.mxu0 0.0
        %280 = vmatpush1.msra.mxu0 0.0
        %281 = vmatprep.subr.mxu0 0.0
        %282 = vmatpush1.msra.mxu0 0.0
        %283 = vmatprep.subr.mxu0 0.0
        %284 = vmatpush1.msra.mxu0 0.0
        %285 = vmatprep.subr.mxu0 0.0
        %286 = vmatpush1.msra.mxu0 0.0
        %287 = vmatprep.subr.mxu0 0.0
        %288 = vmatpush1.msra.mxu0 0.0
        %289 = vmatprep.subr.mxu0 0.0
        %290 = vmatpush1.msra.mxu0 0.0
        %291 = vmatprep.subr.mxu0 0.0
        %292 = vmatpush1.msra.mxu0 0.0
        %293 = vmatprep.subr.mxu0 0.0
        %294 = vmatpush1.msra.mxu0 0.0
        %295 = vmatprep.subr.mxu0 0.0
        %296 = vmatpush1.msra.mxu0 0.0
        %297 = vmatprep.subr.mxu0 0.0
        %298 = vmatpush1.msra.mxu0 0.0
        %299 = vmatprep.subr.mxu0 0.0
        %300 = vmatpush1.msra.mxu0 0.0
        %301 = vmatprep.subr.mxu0 0.0
        %302 = vmatpush1.msra.mxu0 0.0
        %303 = vmatprep.subr.mxu0 0.0
        %304 = vmatpush1.msra.mxu0 0.0
        %305 = vmatprep.subr.mxu0 0.0
        %306 = vmatpush1.msra.mxu0 0.0
        %307 = vmatprep.subr.mxu0 0.0
        %308 = vmatpush1.msra.mxu0 0.0
        %309 = vmatprep.subr.mxu0 0.0
        %310 = vmatpush1.msra.mxu0 0.0
        %311 = vmatprep.subr.mxu0 0.0
        %312 = vmatpush1.msra.mxu0 0.0
        %313 = vmatprep.subr.mxu0 0.0
        %314 = vmatpush1.msra.mxu0 0.0
        %315 = vmatprep.subr.mxu0 0.0
        %316 = vmatpush1.msra.mxu0 0.0
        %317 = vmatprep.subr.mxu0 0.0
        %318 = vmatpush1.msra.mxu0 0.0
        %319 = vmatprep.subr.mxu0 0.0
        %320 = vmatpush1.msra.mxu0 0.0
        %321 = vmatprep.mubr.f32.mxu0 0.0
        %322 = vmatmul.mubr.f32.gmra.mrb[0].mxu0 %v255
        %v323 = vpop.f32.mrb[0].mxu0
        %v324 = vadd.f32 %v251, %v323
        %v325 = vpop.f32.mrb[0].mxu0
        %326 = vdwg.mxu0
        %s327 = smul.u32 %s26, 128
        %s328 = sshra.s32 %s327, 7
        %s329 = sand.u32 %s327, 127
        %s330 = scalar_lea.vmem %s230, %s328 [#allocation9]
        %331 = vst [vmem:[%s330] sm:$0xff] %v324
        %v332 = vld [vmem:[#allocation2] sm:$0xff]
        %333 = vmax.xlane.f32.xlu0 %v324
        %v334 = vpop.xlane.xlu0 %333
        %v335 = vmax.f32 %v332, %v334
        %v336 = vld [vmem:[#allocation3] sm:$0xff]
        %v337 = vsub.f32 %v332, %v335
        %v338 = vmul.f32 %v337, 1.442695
        %v339 = vpow.pop %v338
        %v340 = vmul.f32 %v336, %v339
        %342 = vset.pattern.permute.xlu0 0
        %343 = vperm.xlu0 %342, %v335
        %v344 = vpop.permute.xlu0 %343
        %v346 = vsub.f32 %v324, %v344
        %v347 = vmul.f32 %v346, 1.442695
        %v348 = vpow.pop %v347
        %349 = vadd.xlane.f32.xlu0 %v348
        %v350 = vpop.xlane.xlu0 %349
        %v351 = vadd.f32 %v340, %v350
        %vm352 = vcmask 7168
        %353 = vst.msk [vmem:[#allocation3] sm:$0xff] %vm352, %v351
        %354 = vst.msk [vmem:[#allocation2] sm:$0xff] %vm352, %v335
        // Predicated region
        $region45: #{mask_language_model.1} parent=31 // pred_check
          %p355 = pneg %p234
        $region46: #{mask_language_model.1} parent=31 // pred_check_branch
          %357 = sbr.rel (%p355) target = $region48
        $region47: #{mask_language_model.1} parent=31 // pred_region
          %v358 = vld [vmem:[#allocation2] sm:$0xff]
          %v359 = vld [vmem:[#allocation3] sm:$0xff]
          %v360 = vlog2.pop %v359
          %v361 = vmul.f32 %v360, 0.6931472
          %v362 = vadd.f32 %v358, %v361
          %v363 = vld [vmem:[%s230] sm:$0xff]
          %365 = vset.pattern.permute.xlu0 0
          %366 = vperm.xlu0 %365, %v362
          %v367 = vpop.permute.xlu0 %366
          %v369 = vsub.f32 %v363, %v367
          %370 = vst [vmem:[%s230] sm:$0xff] %v369
        $region48: #{mask_language_model.1} parent=31 // pred_fallthru
          _
        %s371 = sand.u32 %s119, 1
        %s372 = scalar_lea.sflag [#allocation6], %s371
        %s373 = sand.u32 %s119, 1
        %s374 = smul.addr %s373, 8
        %s375 = scalar_lea.vmem [#allocation9], %s374
        // Predicated region
        $region49: #{mask_language_model.1} parent=31 // pred_check
          %p376 = pneg %p129
        $region50: #{mask_language_model.1} parent=31 // pred_check_branch
          %378 = sbr.rel (%p376) target = $region52
        $region51: #{mask_language_model.1} parent=31 // pred_region
          %s380 = ssub.s32 128, 128
          %381 = vsyncadd %s372, %s380
          %s382 = smul.addr %s25, 128
          %s383 = scalar_lea.hbm %s3, %s382
          %s385 = sshll.u32 %s375, 4
          %s386 = int_to_ptr.vmem [resolvable:$true] %s385
          %388 = dma.vmem_to_hbm [thread:$0]  %s386, 128, %s383, %s372
        $region52: #{mask_language_model.1} parent=31 // pred_fallthru
          _
      $region32: #{mask_language_model.1} parent=5 // pred_fallthru
        _
      %p389 = scmp.le.s32.totalorder 2, %s16
      // Predicated region
      $region53: #{mask_language_model.1} parent=5 // pred_check
        %p390 = pneg %p389
      $region54: #{mask_language_model.1} parent=5 // pred_check_branch
        %392 = sbr.rel (%p390) target = $region56
      $region55: #{mask_language_model.1} parent=5 // pred_region
        %s393 = ssub.s32 %s16, 2
        // Predicated region
        $region57: #{mask_language_model.1} parent=55 // pred_check
          %p394 = pneg %p135
        $region58: #{mask_language_model.1} parent=55 // pred_check_branch
          %396 = sbr.rel (%p394) target = $region60
        $region59: #{mask_language_model.1} parent=55 // pred_region
          %s397 = sand.u32 %s120, 1
          %s398 = scalar_lea.sflag [#allocation6], %s397
          %s399 = sand.u32 %s120, 1
          %s400 = smul.addr %s399, 8
          %s401 = scalar_lea.vmem [#allocation9], %s400
          %402 = dma.done %s398, 128
        $region60: #{mask_language_model.1} parent=55 // pred_fallthru
          _
      $region56: #{mask_language_model.1} parent=5 // pred_fallthru
        _
    $region6: #{mask_language_model.1} parent=1 // loop_footer
      %s20 = sadd.s32 1, %s16
    $region7: #{mask_language_model.1} parent=1 // loop_footer_branch
      %15 = sbr.rel target = $region3
    $region8: #{mask_language_model.1} parent=1 // loop_exit
      _
    %403 = vsyncpa [#allocation5], 1
    %s404 = scalar_lea.sflag [#allocation5], 1
    %405 = vsyncpa %s404, 1
    %406 = vsyncpa [#allocation8], 1
    %407 = vsyncpa [#allocation6], 1
    %s408 = scalar_lea.sflag [#allocation6], 1
    %409 = vsyncpa %s408, 1

</llo_original>
